<compile_context>
chip_gen: v6e
topology: v6e:2x2x1
jax: 0.10.0
libtpu: 0.0.40
codegen_flags: <defaults>
</compile_context>

<pallas_src>
import functools

import jax
import jax.numpy as jnp
from jax.experimental import pallas as pl
from jax.experimental.pallas import tpu as pltpu


# ----------------------------------------------------------------------------
# In-kernel counter-based PRNG + inverse normal CDF
# ----------------------------------------------------------------------------
def _mix32(x):
    """lowbias32-style 32-bit integer mixer (good avalanche, VPU-only ops)."""
    x = x ^ (x >> 16)
    x = x * jnp.uint32(0x7FEB352D)
    x = x ^ (x >> 15)
    x = x * jnp.uint32(0x846CA68B)
    x = x ^ (x >> 16)
    return x


def _ndtri(p):
    """Inverse standard-normal CDF (Acklam's rational approximation).

    Uses only +, *, /, log, sqrt, where -> lowers cleanly on TPU Mosaic and in
    interpret mode. |relative error| < ~1.2e-9 (far below f32 precision).
    """
    a1, a2, a3 = -3.969683028665376e+01, 2.209460984245205e+02, -2.759285104469687e+02
    a4, a5, a6 = 1.383577518672690e+02, -3.066479806614716e+01, 2.506628277459239e+00
    b1, b2, b3 = -5.447609879822406e+01, 1.615858368580409e+02, -1.556989798598866e+02
    b4, b5 = 6.680131188771972e+01, -1.328068155288572e+01
    c1, c2, c3 = -7.784894002430293e-03, -3.223964580411365e-01, -2.400758277161838e+00
    c4, c5, c6 = -2.549732539343734e+00, 4.374664141464968e+00, 2.938163982698783e+00
    d1, d2, d3, d4 = 7.784695709041462e-03, 3.224671290700398e-01, 2.445134137142996e+00, 3.754408661907416e+00
    p_low = 0.02425
    p_high = 1.0 - p_low

    # Central region.
    q = p - 0.5
    r = q * q
    x_c = ((((((a1 * r + a2) * r + a3) * r + a4) * r + a5) * r + a6) * q) / \
          (((((b1 * r + b2) * r + b3) * r + b4) * r + b5) * r + 1.0)

    # Lower tail (p is bounded away from 0 by construction -> log is finite).
    ql = jnp.sqrt(-2.0 * jnp.log(p))
    x_l = (((((c1 * ql + c2) * ql + c3) * ql + c4) * ql + c5) * ql + c6) / \
          ((((d1 * ql + d2) * ql + d3) * ql + d4) * ql + 1.0)

    # Upper tail (1 - p is bounded away from 0 by construction).
    qu = jnp.sqrt(-2.0 * jnp.log(1.0 - p))
    x_u = -(((((c1 * qu + c2) * qu + c3) * qu + c4) * qu + c5) * qu + c6) / \
           ((((d1 * qu + d2) * qu + d3) * qu + d4) * qu + 1.0)

    return jnp.where(p < p_low, x_l, jnp.where(p > p_high, x_u, x_c))


# ----------------------------------------------------------------------------
# Kernel
# ----------------------------------------------------------------------------
def _make_noise_kernel(mu: float, sigma: float):
    mu = float(mu)
    sigma = float(sigma)

    def kernel(seed_ref, out_ref):
        tb, a = out_ref.shape
        i = pl.program_id(0)

        # Global element index of every slot in this output tile.
        row = jax.lax.broadcasted_iota(jnp.int32, (tb, a), 0)
        col = jax.lax.broadcasted_iota(jnp.int32, (tb, a), 1)
        gidx = ((i * tb + row) * a + col).astype(jnp.uint32)

        # Counter-based hash: value depends only on (global index, seed), so
        # tiling / megacore sharding never changes or duplicates the noise.
        seed_u = seed_ref[0].astype(jnp.uint32)
        h = _mix32(gidx ^ seed_u)
        h = _mix32(h + jnp.uint32(0x9E3779B9))

        # Top 23 bits -> uniform in (0, 1), strictly inside the open interval
        # (min 2^-24, max 1 - 2^-24) so the tail logs stay finite.
        b23 = (h >> 9).astype(jnp.int32)
        u = (b23.astype(jnp.float32) + 0.5) * jnp.float32(1.0 / 8388608.0)

        # Standard normal, then scale/shift in f32; cast only at the store.
        z = _ndtri(u)
        noise = z * jnp.float32(sigma)
        if mu != 0.0:  # statically skip the extra VPU add when mu == 0
            noise = noise + jnp.float32(mu)
        out_ref[...] = noise.astype(out_ref.dtype)

    return kernel


# ----------------------------------------------------------------------------
# Wrapper
# ----------------------------------------------------------------------------
def _pick_tile_rows(n_rows: int, n_cols: int, itemsize: int) -> int:
    """Largest batch-tile that keeps the (double-buffered) output tile small.

    ~4 MiB per output buffer -> ~8 MiB VMEM, safely under the scoped-VMEM
    default on v5e/v6e and the smaller 64 MiB physical VMEM on v7x.
    """
    sub_mult = max(8, 32 // itemsize)          # 8 for f32, 16 for bf16, ...
    target_bytes = 4 * 1024 * 1024
    tb = max(sub_mult, target_bytes // max(1, n_cols * itemsize))
    if tb >= n_rows:
        return n_rows                           # full-extent block is always legal
    return max(sub_mult, (tb // sub_mult) * sub_mult)


@functools.partial(jax.jit, static_argnames=("mu", "sigma"))
def _noise_call(seed_arr, action, *, mu, sigma):
    orig_shape = action.shape
    a2 = action.reshape(1, -1) if action.ndim == 1 else action.reshape(-1, orig_shape[-1])
    n_rows, n_cols = a2.shape
    dtype = a2.dtype
    tb = _pick_tile_rows(n_rows, n_cols, jnp.dtype(dtype).itemsize)

    out = pl.pallas_call(
        _make_noise_kernel(mu, sigma),
        out_shape=jax.ShapeDtypeStruct((n_rows, n_cols), dtype),
        grid_spec=pltpu.PrefetchScalarGridSpec(
            num_scalar_prefetch=1,              # seed lands in SMEM
            grid=(pl.cdiv(n_rows, tb),),
            in_specs=[],                        # `action` is never read -> no input DMA
            out_specs=pl.BlockSpec((tb, n_cols), lambda i, seed_ref: (i, 0)),
        ),
        compiler_params=pltpu.CompilerParams(
            dimension_semantics=("parallel",),  # shards across v7x's 2 TensorCores
        ),
    )(seed_arr)
    return out.reshape(orig_shape)


def noise_forward(action: jax.Array, *, mu: float, sigma: float, seed: int) -> jax.Array:
    """Pallas equivalent of Noise(mu, sigma).forward(action).

    # TODO(synk): unlike torch.randn_like, there is no implicit global RNG
    # state here; pass a fresh `seed` per call to get new noise each step.
    """
    seed_arr = jnp.asarray([seed], dtype=jnp.int32)
    return _noise_call(seed_arr, action, mu=float(mu), sigma=float(sigma))


# ----------------------------------------------------------------------------
# Demo / sanity check
# ----------------------------------------------------------------------------
if __name__ == "__main__":
    mu, sigma = 0.0, 0.2

    key = jax.random.PRNGKey(0)
    # Small action batch: (batch=8, action_dim=128) — tile-aligned for TPU.
    action = jax.random.normal(key, (8, 128), dtype=jnp.float32)

    noise = noise_forward(action, mu=mu, sigma=sigma, seed=1234)
    noise = jax.block_until_ready(noise)

    assert noise.shape == action.shape
    assert noise.dtype == action.dtype
    m = float(jnp.mean(noise))
    s = float(jnp.std(noise))
    assert abs(m - mu) < 0.05, f"mean off: {m}"
    assert abs(s - sigma) < 0.05, f"std off: {s}"

    print("KERNEL_OK")
</pallas_src>

<mosaic_0001>
module attributes {stable_mosaic.version = 11 : i64} {
  func.func @kernel(%arg0: i32, %arg1: memref<1xi32, #tpu.memory_space<smem>>, %arg2: memref<8x128xf32, #tpu.memory_space<vmem>>) attributes {dimension_semantics = [#tpu.dimension_semantics<parallel>], iteration_bounds = array<i64: 1>, scalar_prefetch = 1 : i64, scratch_operands = 0 : i64, tpu.core_type = #tpu.core_type<tc>, window_params = [{transform_indices = @transform_0, window_bounds = array<i64: 8, 128>}]} {
    %0 = tpu.iota {dimensions = array<i32: 0>} : vector<8x128xi32>
    %1 = tpu.iota {dimensions = array<i32: 1>} : vector<8x128xi32>
    %c8_i32 = arith.constant 8 : i32
    %2 = arith.muli %arg0, %c8_i32 : i32
    %3 = vector.broadcast %2 : i32 to vector<8x128xi32>
    %4 = arith.addi %3, %0 : vector<8x128xi32>
    %c128_i32 = arith.constant 128 : i32
    %5 = vector.broadcast %c128_i32 : i32 to vector<8x128xi32>
    %6 = arith.muli %4, %5 : vector<8x128xi32>
    %7 = arith.addi %6, %1 : vector<8x128xi32>
    %c0 = arith.constant 0 : index
    %8 = memref.load %arg1[%c0] : memref<1xi32, #tpu.memory_space<smem>>
    %9 = vector.broadcast %8 : i32 to vector<8x128xi32>
    %10 = arith.xori %7, %9 : vector<8x128xi32>
    %c16_i32 = arith.constant 16 : i32
    %11 = vector.broadcast %c16_i32 : i32 to vector<8x128xi32>
    %12 = arith.shrui %10, %11 : vector<8x128xi32>
    %13 = arith.xori %10, %12 : vector<8x128xi32>
    %c2146121005_i32 = arith.constant 2146121005 : i32
    %14 = vector.broadcast %c2146121005_i32 : i32 to vector<8x128xi32>
    %15 = arith.muli %13, %14 : vector<8x128xi32>
    %c15_i32 = arith.constant 15 : i32
    %16 = vector.broadcast %c15_i32 : i32 to vector<8x128xi32>
    %17 = arith.shrui %15, %16 : vector<8x128xi32>
    %18 = arith.xori %15, %17 : vector<8x128xi32>
    %c-2073254261_i32 = arith.constant -2073254261 : i32
    %19 = vector.broadcast %c-2073254261_i32 : i32 to vector<8x128xi32>
    %20 = arith.muli %18, %19 : vector<8x128xi32>
    %c16_i32_0 = arith.constant 16 : i32
    %21 = vector.broadcast %c16_i32_0 : i32 to vector<8x128xi32>
    %22 = arith.shrui %20, %21 : vector<8x128xi32>
    %23 = arith.xori %20, %22 : vector<8x128xi32>
    %c-1640531527_i32 = arith.constant -1640531527 : i32
    %24 = vector.broadcast %c-1640531527_i32 : i32 to vector<8x128xi32>
    %25 = arith.addi %23, %24 : vector<8x128xi32>
    %c16_i32_1 = arith.constant 16 : i32
    %26 = vector.broadcast %c16_i32_1 : i32 to vector<8x128xi32>
    %27 = arith.shrui %25, %26 : vector<8x128xi32>
    %28 = arith.xori %25, %27 : vector<8x128xi32>
    %c2146121005_i32_2 = arith.constant 2146121005 : i32
    %29 = vector.broadcast %c2146121005_i32_2 : i32 to vector<8x128xi32>
    %30 = arith.muli %28, %29 : vector<8x128xi32>
    %c15_i32_3 = arith.constant 15 : i32
    %31 = vector.broadcast %c15_i32_3 : i32 to vector<8x128xi32>
    %32 = arith.shrui %30, %31 : vector<8x128xi32>
    %33 = arith.xori %30, %32 : vector<8x128xi32>
    %c-2073254261_i32_4 = arith.constant -2073254261 : i32
    %34 = vector.broadcast %c-2073254261_i32_4 : i32 to vector<8x128xi32>
    %35 = arith.muli %33, %34 : vector<8x128xi32>
    %c16_i32_5 = arith.constant 16 : i32
    %36 = vector.broadcast %c16_i32_5 : i32 to vector<8x128xi32>
    %37 = arith.shrui %35, %36 : vector<8x128xi32>
    %38 = arith.xori %35, %37 : vector<8x128xi32>
    %c9_i32 = arith.constant 9 : i32
    %39 = vector.broadcast %c9_i32 : i32 to vector<8x128xi32>
    %40 = arith.shrui %38, %39 : vector<8x128xi32>
    %41 = arith.sitofp %40 : vector<8x128xi32> to vector<8x128xf32>
    %cst = arith.constant 5.000000e-01 : f32
    %42 = vector.broadcast %cst : f32 to vector<8x128xf32>
    %43 = arith.addf %41, %42 : vector<8x128xf32>
    %cst_6 = arith.constant 1.1920929E-7 : f32
    %44 = vector.broadcast %cst_6 : f32 to vector<8x128xf32>
    %45 = arith.mulf %43, %44 : vector<8x128xf32>
    %cst_7 = arith.constant 5.000000e-01 : f32
    %46 = vector.broadcast %cst_7 : f32 to vector<8x128xf32>
    %47 = arith.subf %45, %46 : vector<8x128xf32>
    %48 = arith.mulf %47, %47 : vector<8x128xf32>
    %cst_8 = arith.constant -39.6968307 : f32
    %49 = vector.broadcast %cst_8 : f32 to vector<8x128xf32>
    %50 = arith.mulf %49, %48 : vector<8x128xf32>
    %cst_9 = arith.constant 220.946106 : f32
    %51 = vector.broadcast %cst_9 : f32 to vector<8x128xf32>
    %52 = arith.addf %50, %51 : vector<8x128xf32>
    %53 = arith.mulf %52, %48 : vector<8x128xf32>
    %cst_10 = arith.constant -275.928497 : f32
    %54 = vector.broadcast %cst_10 : f32 to vector<8x128xf32>
    %55 = arith.addf %53, %54 : vector<8x128xf32>
    %56 = arith.mulf %55, %48 : vector<8x128xf32>
    %cst_11 = arith.constant 138.357758 : f32
    %57 = vector.broadcast %cst_11 : f32 to vector<8x128xf32>
    %58 = arith.addf %56, %57 : vector<8x128xf32>
    %59 = arith.mulf %58, %48 : vector<8x128xf32>
    %cst_12 = arith.constant -30.6647987 : f32
    %60 = vector.broadcast %cst_12 : f32 to vector<8x128xf32>
    %61 = arith.addf %59, %60 : vector<8x128xf32>
    %62 = arith.mulf %61, %48 : vector<8x128xf32>
    %cst_13 = arith.constant 2.50662827 : f32
    %63 = vector.broadcast %cst_13 : f32 to vector<8x128xf32>
    %64 = arith.addf %62, %63 : vector<8x128xf32>
    %65 = arith.mulf %64, %47 : vector<8x128xf32>
    %cst_14 = arith.constant -54.4760971 : f32
    %66 = vector.broadcast %cst_14 : f32 to vector<8x128xf32>
    %67 = arith.mulf %66, %48 : vector<8x128xf32>
    %cst_15 = arith.constant 161.585831 : f32
    %68 = vector.broadcast %cst_15 : f32 to vector<8x128xf32>
    %69 = arith.addf %67, %68 : vector<8x128xf32>
    %70 = arith.mulf %69, %48 : vector<8x128xf32>
    %cst_16 = arith.constant -155.698975 : f32
    %71 = vector.broadcast %cst_16 : f32 to vector<8x128xf32>
    %72 = arith.addf %70, %71 : vector<8x128xf32>
    %73 = arith.mulf %72, %48 : vector<8x128xf32>
    %cst_17 = arith.constant 66.8013153 : f32
    %74 = vector.broadcast %cst_17 : f32 to vector<8x128xf32>
    %75 = arith.addf %73, %74 : vector<8x128xf32>
    %76 = arith.mulf %75, %48 : vector<8x128xf32>
    %cst_18 = arith.constant -13.2806816 : f32
    %77 = vector.broadcast %cst_18 : f32 to vector<8x128xf32>
    %78 = arith.addf %76, %77 : vector<8x128xf32>
    %79 = arith.mulf %78, %48 : vector<8x128xf32>
    %cst_19 = arith.constant 1.000000e+00 : f32
    %80 = vector.broadcast %cst_19 : f32 to vector<8x128xf32>
    %81 = arith.addf %79, %80 : vector<8x128xf32>
    %82 = arith.divf %65, %81 : vector<8x128xf32>
    %83 = math.log %45 : vector<8x128xf32>
    %cst_20 = arith.constant -2.000000e+00 : f32
    %84 = vector.broadcast %cst_20 : f32 to vector<8x128xf32>
    %85 = arith.mulf %84, %83 : vector<8x128xf32>
    %86 = math.sqrt %85 : vector<8x128xf32>
    %cst_21 = arith.constant -0.0077848942 : f32
    %87 = vector.broadcast %cst_21 : f32 to vector<8x128xf32>
    %88 = arith.mulf %87, %86 : vector<8x128xf32>
    %cst_22 = arith.constant -0.322396457 : f32
    %89 = vector.broadcast %cst_22 : f32 to vector<8x128xf32>
    %90 = arith.addf %88, %89 : vector<8x128xf32>
    %91 = arith.mulf %90, %86 : vector<8x128xf32>
    %cst_23 = arith.constant -2.40075827 : f32
    %92 = vector.broadcast %cst_23 : f32 to vector<8x128xf32>
    %93 = arith.addf %91, %92 : vector<8x128xf32>
    %94 = arith.mulf %93, %86 : vector<8x128xf32>
    %cst_24 = arith.constant -2.54973245 : f32
    %95 = vector.broadcast %cst_24 : f32 to vector<8x128xf32>
    %96 = arith.addf %94, %95 : vector<8x128xf32>
    %97 = arith.mulf %96, %86 : vector<8x128xf32>
    %cst_25 = arith.constant 4.37466431 : f32
    %98 = vector.broadcast %cst_25 : f32 to vector<8x128xf32>
    %99 = arith.addf %97, %98 : vector<8x128xf32>
    %100 = arith.mulf %99, %86 : vector<8x128xf32>
    %cst_26 = arith.constant 2.938164 : f32
    %101 = vector.broadcast %cst_26 : f32 to vector<8x128xf32>
    %102 = arith.addf %100, %101 : vector<8x128xf32>
    %cst_27 = arith.constant 0.00778469583 : f32
    %103 = vector.broadcast %cst_27 : f32 to vector<8x128xf32>
    %104 = arith.mulf %103, %86 : vector<8x128xf32>
    %cst_28 = arith.constant 0.322467119 : f32
    %105 = vector.broadcast %cst_28 : f32 to vector<8x128xf32>
    %106 = arith.addf %104, %105 : vector<8x128xf32>
    %107 = arith.mulf %106, %86 : vector<8x128xf32>
    %cst_29 = arith.constant 2.44513416 : f32
    %108 = vector.broadcast %cst_29 : f32 to vector<8x128xf32>
    %109 = arith.addf %107, %108 : vector<8x128xf32>
    %110 = arith.mulf %109, %86 : vector<8x128xf32>
    %cst_30 = arith.constant 3.7544086 : f32
    %111 = vector.broadcast %cst_30 : f32 to vector<8x128xf32>
    %112 = arith.addf %110, %111 : vector<8x128xf32>
    %113 = arith.mulf %112, %86 : vector<8x128xf32>
    %cst_31 = arith.constant 1.000000e+00 : f32
    %114 = vector.broadcast %cst_31 : f32 to vector<8x128xf32>
    %115 = arith.addf %113, %114 : vector<8x128xf32>
    %116 = arith.divf %102, %115 : vector<8x128xf32>
    %cst_32 = arith.constant 1.000000e+00 : f32
    %117 = vector.broadcast %cst_32 : f32 to vector<8x128xf32>
    %118 = arith.subf %117, %45 : vector<8x128xf32>
    %119 = math.log %118 : vector<8x128xf32>
    %cst_33 = arith.constant -2.000000e+00 : f32
    %120 = vector.broadcast %cst_33 : f32 to vector<8x128xf32>
    %121 = arith.mulf %120, %119 : vector<8x128xf32>
    %122 = math.sqrt %121 : vector<8x128xf32>
    %cst_34 = arith.constant -0.0077848942 : f32
    %123 = vector.broadcast %cst_34 : f32 to vector<8x128xf32>
    %124 = arith.mulf %123, %122 : vector<8x128xf32>
    %cst_35 = arith.constant -0.322396457 : f32
    %125 = vector.broadcast %cst_35 : f32 to vector<8x128xf32>
    %126 = arith.addf %124, %125 : vector<8x128xf32>
    %127 = arith.mulf %126, %122 : vector<8x128xf32>
    %cst_36 = arith.constant -2.40075827 : f32
    %128 = vector.broadcast %cst_36 : f32 to vector<8x128xf32>
    %129 = arith.addf %127, %128 : vector<8x128xf32>
    %130 = arith.mulf %129, %122 : vector<8x128xf32>
    %cst_37 = arith.constant -2.54973245 : f32
    %131 = vector.broadcast %cst_37 : f32 to vector<8x128xf32>
    %132 = arith.addf %130, %131 : vector<8x128xf32>
    %133 = arith.mulf %132, %122 : vector<8x128xf32>
    %cst_38 = arith.constant 4.37466431 : f32
    %134 = vector.broadcast %cst_38 : f32 to vector<8x128xf32>
    %135 = arith.addf %133, %134 : vector<8x128xf32>
    %136 = arith.mulf %135, %122 : vector<8x128xf32>
    %cst_39 = arith.constant 2.938164 : f32
    %137 = vector.broadcast %cst_39 : f32 to vector<8x128xf32>
    %138 = arith.addf %136, %137 : vector<8x128xf32>
    %cst_40 = arith.constant 0.000000e+00 : f32
    %139 = vector.broadcast %cst_40 : f32 to vector<8x128xf32>
    %140 = arith.subf %139, %138 : vector<8x128xf32>
    %cst_41 = arith.constant 0.00778469583 : f32
    %141 = vector.broadcast %cst_41 : f32 to vector<8x128xf32>
    %142 = arith.mulf %141, %122 : vector<8x128xf32>
    %cst_42 = arith.constant 0.322467119 : f32
    %143 = vector.broadcast %cst_42 : f32 to vector<8x128xf32>
    %144 = arith.addf %142, %143 : vector<8x128xf32>
    %145 = arith.mulf %144, %122 : vector<8x128xf32>
    %cst_43 = arith.constant 2.44513416 : f32
    %146 = vector.broadcast %cst_43 : f32 to vector<8x128xf32>
    %147 = arith.addf %145, %146 : vector<8x128xf32>
    %148 = arith.mulf %147, %122 : vector<8x128xf32>
    %cst_44 = arith.constant 3.7544086 : f32
    %149 = vector.broadcast %cst_44 : f32 to vector<8x128xf32>
    %150 = arith.addf %148, %149 : vector<8x128xf32>
    %151 = arith.mulf %150, %122 : vector<8x128xf32>
    %cst_45 = arith.constant 1.000000e+00 : f32
    %152 = vector.broadcast %cst_45 : f32 to vector<8x128xf32>
    %153 = arith.addf %151, %152 : vector<8x128xf32>
    %154 = arith.divf %140, %153 : vector<8x128xf32>
    %cst_46 = arith.constant 2.425000e-02 : f32
    %155 = vector.broadcast %cst_46 : f32 to vector<8x128xf32>
    %156 = arith.cmpf olt, %45, %155 : vector<8x128xf32>
    %cst_47 = arith.constant 9.757500e-01 : f32
    %157 = vector.broadcast %cst_47 : f32 to vector<8x128xf32>
    %158 = arith.cmpf ogt, %45, %157 : vector<8x128xf32>
    %159 = arith.select %158, %154, %82 : vector<8x128xi1>, vector<8x128xf32>
    %160 = arith.select %156, %116, %159 : vector<8x128xi1>, vector<8x128xf32>
    %cst_48 = arith.constant 2.000000e-01 : f32
    %161 = vector.broadcast %cst_48 : f32 to vector<8x128xf32>
    %162 = arith.mulf %160, %161 : vector<8x128xf32>
    %c0_49 = arith.constant 0 : index
    %c0_50 = arith.constant 0 : index
    %163 = vector.load %arg2[%c0_49, %c0_50] : memref<8x128xf32, #tpu.memory_space<vmem>>, vector<8x128xf32>
    tpu.vector_store %arg2[%c0_49, %c0_50], %162 {strides = array<i32>} : memref<8x128xf32, #tpu.memory_space<vmem>>, vector<8x128xf32>,
    return
  }
  func.func @transform_0(%arg0: i32, %arg1: memref<1xi32, #tpu.memory_space<smem>>) -> (i32, i32) {
    %c0_i32 = arith.constant 0 : i32
    %c0_i32_0 = arith.constant 0 : i32
    return %arg0, %c0_i32 : i32, i32
  }
}

</mosaic_0001>

<llo_original>
// kernel: _noise_call.1
$region0: #{_noise_call.1}
  #allocation0 [shape = 'u32[]', space=smem, size = 0x4, offset = 0x4, fixed_abs, tag = 'smem constant byte address 0x4 - core index']
  #allocation1 [shape = 'u32[144,128]{1,0:T(1,128)}', space=vmem, size = 0x12000, scoped, tag = 'internal scratch']
  #allocation2 [shape = 's32[1]{0}', space=sflag, size = 0x4, scoped, tag = 'scoped memory for _noise_call.1']
  #allocation3 [shape = 's32[1]{0:T(128)S(6)}', space=smem, size = 0x200, scoped, tag = 'prefetched SMEM operand 0']
  %s0 = inlined_call_operand.<no memory space> [shape: s32[1], index: 0, kind: input, shape index: {}]
  %s1 = inlined_call_operand.hbm [shape: f32[8,128], index: 1, kind: output, shape index: {}]
  %s2 = sld [smem:[#allocation0]]
  $region10: #{_noise_call.1} parent=0
    _
  %s4 = ssub.s32 1, %s2
  %s5 = scalar_select 0, %s4, %s2
  %6 = sst [smem:[#allocation3]] %s0
  $region1: #{_noise_call.1} parent=0
    #allocation4 [shape = 'u8[4096]{0}', space=vmem, size = 0x1000, scoped, tag = 'output window, operand 0, single buffered']
    #allocation5 [shape = 's32[1]{0}', space=sflag, size = 0x4, scoped, tag = 'scoped memory for _noise_call.1']
    %7 = vsyncpa [#allocation5], 0
    %v8 = vlaneseq
    %v9 = vshrl.u32 %v8, 7
    %v10 = vlaneseq
    %v11 = vand.u32 %v10, 127
    %s12 = smul.u32 0, 8
    %v13 = vstv %s12
    %v14 = vadd.s32 %v13, %v9
    %v15 = vmul.u32 %v14, 128
    %v16 = vadd.s32 %v15, %v11
    %s17 = sld [smem:[#allocation3]]
    %v18 = vstv %s17
    %v19 = vxor.u32 %v16, %v18
    %v20 = vshrl.u32 %v19, 16
    %v21 = vxor.u32 %v19, %v20
    %v22 = vmul.u32 %v21, 2146121005
    %v23 = vshrl.u32 %v22, 15
    %v24 = vxor.u32 %v22, %v23
    %v25 = vmul.u32 %v24, 2221713035
    %v26 = vshrl.u32 %v25, 16
    %v27 = vxor.u32 %v25, %v26
    %v28 = vadd.s32 %v27, 2654435769
    %v29 = vshrl.u32 %v28, 16
    %v30 = vxor.u32 %v28, %v29
    %v31 = vmul.u32 %v30, 2146121005
    %v32 = vshrl.u32 %v31, 15
    %v33 = vxor.u32 %v31, %v32
    %v34 = vmul.u32 %v33, 2221713035
    %v35 = vshrl.u32 %v34, 16
    %v36 = vxor.u32 %v34, %v35
    %v37 = vshrl.u32 %v36, 9
    %v38 = vcvt.s32.f32 %v37
    %v39 = vadd.f32 %v38, 0.5
    %v40 = vmul.f32 %v39, 1.1920929e-07
    %v41 = vsub.f32 %v40, 0.5
    %v42 = vmul.f32 %v41, %v41
    %v43 = vmul.f32 %v42, -39.69683
    %v44 = vadd.f32 %v43, 220.9461
    %v45 = vmul.f32 %v44, %v42
    %v46 = vadd.f32 %v45, -275.9285
    %v47 = vmul.f32 %v46, %v42
    %v48 = vadd.f32 %v47, 138.35776
    %v49 = vmul.f32 %v48, %v42
    %v50 = vadd.f32 %v49, -30.664799
    %v51 = vmul.f32 %v50, %v42
    %v52 = vadd.f32 %v51, 2.5066283
    %v53 = vmul.f32 %v52, %v41
    %v54 = vmul.f32 %v42, -54.476097
    %v55 = vadd.f32 %v54, 161.58583
    %v56 = vmul.f32 %v55, %v42
    %v57 = vadd.f32 %v56, -155.69897
    %v58 = vmul.f32 %v57, %v42
    %v59 = vadd.f32 %v58, 66.801315
    %v60 = vmul.f32 %v59, %v42
    %v61 = vadd.f32 %v60, -13.280682
    %v62 = vmul.f32 %v61, %v42
    %v63 = vadd.f32 %v62, 1.0
    %v64 = vrcp.pop %v63
    %v65 = vmul.f32 %v53, %v64
    %v66 = vlog2.pop %v40
    %v67 = vmul.f32 %v66, 0.6931472
    %v68 = vmul.f32 %v67, -2.0
    %v69 = vrsqrt.pop %v68
    %v70 = vmul.f32 %v68, %v69
    %vm71 = vcmp.eq.f32.partialorder %v68, inf
    %v72 = vsel %vm71, %v68, %v70
    %vm73 = vcmp.eq.f32.partialorder %v68, 0.0
    %v74 = vand.u32 %v68, 2147483648
    %v75 = vsel %vm73, %v74, %v72
    %v76 = vmul.f32 %v75, -0.007784894
    %v77 = vadd.f32 %v76, -0.32239646
    %v78 = vmul.f32 %v77, %v75
    %v79 = vadd.f32 %v78, -2.4007583
    %v80 = vmul.f32 %v79, %v75
    %v81 = vadd.f32 %v80, -2.5497324
    %v82 = vmul.f32 %v81, %v75
    %v83 = vadd.f32 %v82, 4.3746643
    %v84 = vmul.f32 %v83, %v75
    %v85 = vadd.f32 %v84, 2.938164
    %v86 = vmul.f32 %v75, 0.007784696
    %v87 = vadd.f32 %v86, 0.32246712
    %v88 = vmul.f32 %v87, %v75
    %v89 = vadd.f32 %v88, 2.4451342
    %v90 = vmul.f32 %v89, %v75
    %v91 = vadd.f32 %v90, 3.7544086
    %v92 = vmul.f32 %v91, %v75
    %v93 = vadd.f32 %v92, 1.0
    %v94 = vrcp.pop %v93
    %v95 = vmul.f32 %v85, %v94
    %v96 = vsub.f32 1.0, %v40
    %v97 = vlog2.pop %v96
    %v98 = vmul.f32 %v97, 0.6931472
    %v99 = vmul.f32 %v98, -2.0
    %v100 = vrsqrt.pop %v99
    %v101 = vmul.f32 %v99, %v100
    %vm102 = vcmp.eq.f32.partialorder %v99, inf
    %v103 = vsel %vm102, %v99, %v101
    %vm104 = vcmp.eq.f32.partialorder %v99, 0.0
    %v105 = vand.u32 %v99, 2147483648
    %v106 = vsel %vm104, %v105, %v103
    %v107 = vmul.f32 %v106, -0.007784894
    %v108 = vadd.f32 %v107, -0.32239646
    %v109 = vmul.f32 %v108, %v106
    %v110 = vadd.f32 %v109, -2.4007583
    %v111 = vmul.f32 %v110, %v106
    %v112 = vadd.f32 %v111, -2.5497324
    %v113 = vmul.f32 %v112, %v106
    %v114 = vadd.f32 %v113, 4.3746643
    %v115 = vmul.f32 %v114, %v106
    %v116 = vadd.f32 %v115, 2.938164
    %v117 = vsub.f32 0.0, %v116
    %v118 = vmul.f32 %v106, 0.007784696
    %v119 = vadd.f32 %v118, 0.32246712
    %v120 = vmul.f32 %v119, %v106
    %v121 = vadd.f32 %v120, 2.4451342
    %v122 = vmul.f32 %v121, %v106
    %v123 = vadd.f32 %v122, 3.7544086
    %v124 = vmul.f32 %v123, %v106
    %v125 = vadd.f32 %v124, 1.0
    %v126 = vrcp.pop %v125
    %v127 = vmul.f32 %v117, %v126
    %vm128 = vcmp.lt.f32.partialorder %v40, 0.02425
    %vm129 = vcmp.gt.f32.partialorder %v40, 0.97575
    %v130 = vsel %vm129, %v127, %v65
    %v131 = vsel %vm128, %v95, %v130
    %v132 = vmul.f32 %v131, 0.2
    %133 = vst [vmem:[#allocation4] sm:$0xff] %v132
    // Predicated region
    $region2: #{_noise_call.1} parent=1 // pred_check
      _
    $region3: #{_noise_call.1} parent=1 // pred_check_branch
      %135 = sbr.rel (0) target = $region5
    $region4: #{_noise_call.1} parent=1 // pred_region
      %s137 = ssub.s32 128, 128
      %138 = vsyncadd [#allocation5], %s137
      %s140 = sshll.u32 [#allocation4], 4
      %s141 = int_to_ptr.vmem [resolvable:$true] %s140
      %143 = dma.vmem_to_hbm [thread:$0]  %s141, 128, %s1, [#allocation5]
    $region5: #{_noise_call.1} parent=1 // pred_fallthru
      _
    // Predicated region
    $region6: #{_noise_call.1} parent=1 // pred_check
      _
    $region7: #{_noise_call.1} parent=1 // pred_check_branch
      %145 = sbr.rel (0) target = $region9
    $region8: #{_noise_call.1} parent=1 // pred_region
      %146 = dma.done [#allocation5], 128
    $region9: #{_noise_call.1} parent=1 // pred_fallthru
      _
    %147 = vsyncpa [#allocation5], 1

</llo_original>
